<compile_context>
chip_gen: v6e
topology: v6e:2x2x1
jax: 0.10.0
libtpu: 0.0.40
codegen_flags: <defaults>
</compile_context>

<pallas_src>
import functools

import numpy as np

import jax
import jax.numpy as jnp
from jax.experimental import pallas as pl
from jax.experimental.pallas import tpu as pltpu


def _round_up(x, m):
    return ((x + m - 1) // m) * m


@functools.lru_cache(maxsize=None)
def _dft_bases(n, m, dtype_name):
    """(n, m) cos/sin DFT bases: entry [i, j] = cos/sin(2*pi*((i*j) mod n)/n).

    Exact integer (i*j) mod n before scaling avoids argument-reduction error.
    """
    i = np.arange(n, dtype=np.int64)[:, None]
    j = np.arange(m, dtype=np.int64)[None, :]
    theta = (2.0 * np.pi / n) * ((i * j) % n).astype(np.float64)
    dt = jnp.dtype(dtype_name)
    return jnp.asarray(np.cos(theta), dtype=dt), jnp.asarray(np.sin(theta), dtype=dt)


def _vmem_capacity_bytes():
    try:
        cap = getattr(pltpu.get_tpu_info(), "vmem_capacity_bytes", None)
        if cap:
            return int(cap)
    except Exception:
        pass
    return 128 << 20  # v5e/v6e physical VMEM; v7x (64 MiB) is reported by the query


def _step_bytes(b, S, H, Hw, mxu_itemsize, out_itemsize):
    """Per-grid-step VMEM working set for a batch tile of b rows."""
    return (2 * b * S * H * mxu_itemsize        # x block, double-buffered
            + 4 * S * b * Hw * out_itemsize     # lo/hi output blocks, double-buffered
            + 2 * S * b * Hw * mxu_itemsize     # wide yr/yi scratch (mxu dtype)
            + 4 * S * b * Hw * 4)               # f32 matmul results (yr, yi, p, q)


def _pick_batch_tile(B, S, H, Hw, mxu_itemsize, out_itemsize, vmem_cap):
    """Batch rows folded per grid step (fills the MXU M-dim for stage 1)."""
    if S % 8 != 0:
        # Block second-minor dims must be sublane multiples unless they span the
        # full array; a single tile (bt=B, grid=1) always satisfies that.
        # TODO(synk): pad S to a multiple of 8 in the wrapper to keep >1 grid step here.
        return B
    bt = max(1, min(B, max(1, 512 // S), 32))   # target a few MXU passes of M, cap unroll
    if B >= 2:
        bt = max(1, min(bt, B // 2))            # >= 2 grid steps so both v7x TCs get work
    budget = max(4 << 20, int(0.35 * vmem_cap))
    while bt > 1 and _step_bytes(bt, S, H, Hw, mxu_itemsize, out_itemsize) > budget:
        bt -= 1
    while B % bt:
        bt -= 1
    return bt


def _fnet_kernel(x_ref, ch_ref, sh_ref, cs_ref, ss_ref, lo_ref, hi_ref,
                 yrw_ref, yiw_ref, *, bt, seq, hw, mxu_dtype):
    # ---- Stage 1: DFT along the hidden axis (half-spectrum, Hermitian). -----
    # x_ref rows are (batch-in-tile, s) pairs -> M = bt*seq keeps the MXU full
    # even when seq is small.
    x2 = x_ref[...]                                               # (bt*seq, H)
    yr = jnp.dot(x2, ch_ref[...], preferred_element_type=jnp.float32)  # (bt*seq, hw)
    yi = jnp.dot(x2, sh_ref[...], preferred_element_type=jnp.float32)

    # Repack stage-1 results into one (seq, bt*hw) slab so stage 2 is a single
    # wide matmul per basis instead of bt narrow ones.  hw is a multiple of 128,
    # so every slice below is lane-tile aligned (pure relayout copies).  Scratch
    # is mxu_dtype; each element is cast exactly once.
    for b in range(bt):          # static, small; data movement only, no matmuls
        yrw_ref[:, b * hw:(b + 1) * hw] = yr[b * seq:(b + 1) * seq, :].astype(mxu_dtype)
        yiw_ref[:, b * hw:(b + 1) * hw] = yi[b * seq:(b + 1) * seq, :].astype(mxu_dtype)

    # ---- Stage 2: DFT along the sequence axis, fused over the batch tile. ---
    p = jnp.dot(cs_ref[...], yrw_ref[...], preferred_element_type=jnp.float32)
    q = jnp.dot(ss_ref[...], yiw_ref[...], preferred_element_type=jnp.float32)
    lo_ref[...] = (p - q).astype(lo_ref.dtype)   # out[..., k],     k = 0..H//2
    hi_ref[...] = (p + q).astype(hi_ref.dtype)   # out[..., H - k]  (mirrored by wrapper)


def fnet_block(x, *, use_bf16_mxu=True):
    """Pallas implementation of FNetBlock.forward.  x: (B, S, H) real array.

    use_bf16_mxu=True (default) feeds the MXU native bf16 operands with f32
    accumulation; use_bf16_mxu=False is an all-f32 path matching the reference
    FFT to ~1e-3.
    """
    B, S, H = x.shape
    out_dtype = x.dtype
    mxu_dtype = jnp.bfloat16 if use_bf16_mxu else jnp.float32
    mxu_itemsize = jnp.dtype(mxu_dtype).itemsize
    out_itemsize = jnp.dtype(out_dtype).itemsize

    Hh = H // 2 + 1                 # independent DFT columns (Hermitian symmetry)
    Hw = _round_up(Hh, 128)         # lane-tile aligned width (same MXU lane-tile cost)

    vmem_cap = _vmem_capacity_bytes()
    bt = _pick_batch_tile(B, S, H, Hw, mxu_itemsize, out_itemsize, vmem_cap)
    gb = B // bt

    basis_name = jnp.dtype(mxu_dtype).name
    c_h, s_h = _dft_bases(H, Hw, basis_name)     # (H, Hw)
    c_s, s_s = _dft_bases(S, S, basis_name)      # (S, S)

    basis_bytes = mxu_itemsize * (2 * H * Hw + 2 * S * S)
    step_bytes = _step_bytes(bt, S, H, Hw, mxu_itemsize, out_itemsize)
    # <= 80% of this chip's VMEM (leaves headroom for compiler-internal scratch,
    # important on v7x's 64 MiB), but never below what this tiling needs + slack.
    vmem_limit = int(min(int(0.80 * vmem_cap),
                         max(basis_bytes + step_bytes + (16 << 20), 32 << 20)))

    cost = pl.CostEstimate(
        flops=4 * B * S * Hw * (H + S),
        transcendentals=0,
        bytes_accessed=(B * S * H * mxu_itemsize
                        + 2 * B * S * Hw * out_itemsize + basis_bytes),
    )

    kernel = functools.partial(_fnet_kernel, bt=bt, seq=S, hw=Hw,
                               mxu_dtype=mxu_dtype)

    # Kernel I/O is 2-D so no in-kernel reshapes are needed: x as (B*S, H), the
    # two half-spectra as ((B//bt)*S, bt*Hw) lane-dense slabs.
    x2 = x.reshape(B * S, H).astype(mxu_dtype)

    lo_w, hi_w = pl.pallas_call(
        kernel,
        out_shape=(jax.ShapeDtypeStruct((gb * S, bt * Hw), out_dtype),
                   jax.ShapeDtypeStruct((gb * S, bt * Hw), out_dtype)),
        grid_spec=pltpu.PrefetchScalarGridSpec(
            num_scalar_prefetch=0,
            grid=(gb,),
            in_specs=[
                pl.BlockSpec((bt * S, H), lambda i: (i, 0)),        # x tile
                # Constant DFT bases: whole-array VMEM residents (single copy,
                # never re-fetched or double-buffered across grid steps).
                pl.BlockSpec(memory_space=pltpu.MemorySpace.VMEM),  # C_H (half)
                pl.BlockSpec(memory_space=pltpu.MemorySpace.VMEM),  # S_H (half)
                pl.BlockSpec(memory_space=pltpu.MemorySpace.VMEM),  # C_S
                pl.BlockSpec(memory_space=pltpu.MemorySpace.VMEM),  # S_S
            ],
            out_specs=[
                pl.BlockSpec((S, bt * Hw), lambda i: (i, 0)),       # P - Q
                pl.BlockSpec((S, bt * Hw), lambda i: (i, 0)),       # P + Q
            ],
            scratch_shapes=[
                pltpu.VMEM((S, bt * Hw), mxu_dtype),   # yr in wide (seq, bt*Hw) layout
                pltpu.VMEM((S, bt * Hw), mxu_dtype),   # yi in wide (seq, bt*Hw) layout
            ],
        ),
        compiler_params=pltpu.CompilerParams(
            dimension_semantics=("parallel",),
            vmem_limit_bytes=vmem_limit,
        ),
        cost_estimate=cost,
    )(x2, c_h, s_h, c_s, s_s)

    # Un-interleave the per-tile wide layout back to (B, S, Hw) and mirror the
    # Hermitian half.  These are cheap XLA ops over the output only; the kernel
    # itself is MXU-bound (arithmetic intensity ~ H + S MACs/element).
    def untangle(w):
        return w.reshape(gb, S, bt, Hw).transpose(0, 2, 1, 3).reshape(B, S, Hw)

    lo = untangle(lo_w)
    hi = untangle(hi_w)
    out = jnp.concatenate(
        [lo[..., :Hh], jnp.flip(hi[..., 1:H - Hh + 1], axis=-1)], axis=-1)
    return out.astype(out_dtype)


if __name__ == "__main__":
    key = jax.random.PRNGKey(0)
    B, S, H = 4, 8, 32
    x = jax.random.normal(key, (B, S, H), dtype=jnp.float32)

    # Reference: same semantics as the PyTorch module.
    ref = jnp.real(jnp.fft.fft(jnp.fft.fft(x, axis=-1), axis=-2)).astype(jnp.float32)

    # Accurate all-f32 mode: matches the reference FFT tightly.
    out_f32 = jax.block_until_ready(fnet_block(x, use_bf16_mxu=False))
    assert out_f32.shape == (B, S, H)
    assert jnp.allclose(out_f32, ref, atol=1e-3, rtol=1e-3), "f32 mode mismatch vs FFT"

    # Default fast mode: bf16 MXU operands, f32 accumulation (looser tolerance).
    out_bf16 = jax.block_until_ready(fnet_block(x))
    assert out_bf16.shape == (B, S, H)
    scale = jnp.max(jnp.abs(ref))
    assert jnp.max(jnp.abs(out_bf16 - ref)) < 5e-2 * scale, "bf16 mode mismatch vs FFT"

    print("KERNEL_OK")
</pallas_src>

<mosaic_0001>
module attributes {stable_mosaic.version = 11 : i64} {
  func.func @_fnet_kernel(%arg0: i32, %arg1: memref<16x32xf32, #tpu.memory_space<vmem>>, %arg2: memref<32x128xf32, #tpu.memory_space<vmem>>, %arg3: memref<32x128xf32, #tpu.memory_space<vmem>>, %arg4: memref<8x8xf32, #tpu.memory_space<vmem>>, %arg5: memref<8x8xf32, #tpu.memory_space<vmem>>, %arg6: memref<8x256xf32, #tpu.memory_space<vmem>>, %arg7: memref<8x256xf32, #tpu.memory_space<vmem>>, %arg8: memref<8x256xf32, #tpu.memory_space<vmem>>, %arg9: memref<8x256xf32, #tpu.memory_space<vmem>>) attributes {dimension_semantics = [#tpu.dimension_semantics<parallel>], iteration_bounds = array<i64: 2>, scalar_prefetch = 0 : i64, scratch_operands = 2 : i64, tpu.core_type = #tpu.core_type<tc>, window_params = [{transform_indices = @transform_0, window_bounds = array<i64: 16, 32>}, {pipeline_mode = #tpu.pipeline_mode<synchronous>, transform_indices = @transform_1, window_bounds = array<i64: 32, 128>}, {pipeline_mode = #tpu.pipeline_mode<synchronous>, transform_indices = @transform_2, window_bounds = array<i64: 32, 128>}, {pipeline_mode = #tpu.pipeline_mode<synchronous>, transform_indices = @transform_3, window_bounds = array<i64: 8, 8>}, {pipeline_mode = #tpu.pipeline_mode<synchronous>, transform_indices = @transform_4, window_bounds = array<i64: 8, 8>}, {transform_indices = @transform_5, window_bounds = array<i64: 8, 256>}, {transform_indices = @transform_6, window_bounds = array<i64: 8, 256>}]} {
    %c0 = arith.constant 0 : index
    %c0_0 = arith.constant 0 : index
    %0 = vector.load %arg1[%c0, %c0_0] : memref<16x32xf32, #tpu.memory_space<vmem>>, vector<16x32xf32>
    %c0_1 = arith.constant 0 : index
    %c0_2 = arith.constant 0 : index
    %1 = vector.load %arg2[%c0_1, %c0_2] : memref<32x128xf32, #tpu.memory_space<vmem>>, vector<32x128xf32>
    %cst = arith.constant dense<0.000000e+00> : vector<16x128xf32>
    %2 = tpu.matmul %0, %1, %cst {dimension_numbers = #tpu.dot_dimension_numbers<[1], [0], [0], [1], [0, 0, 1, 1], [], []>} : vector<16x32xf32>, vector<32x128xf32>, vector<16x128xf32> -> vector<16x128xf32>
    %c0_3 = arith.constant 0 : index
    %c0_4 = arith.constant 0 : index
    %3 = vector.load %arg3[%c0_3, %c0_4] : memref<32x128xf32, #tpu.memory_space<vmem>>, vector<32x128xf32>
    %cst_5 = arith.constant dense<0.000000e+00> : vector<16x128xf32>
    %4 = tpu.matmul %0, %3, %cst_5 {dimension_numbers = #tpu.dot_dimension_numbers<[1], [0], [0], [1], [0, 0, 1, 1], [], []>} : vector<16x32xf32>, vector<32x128xf32>, vector<16x128xf32> -> vector<16x128xf32>
    %5 = vector.extract_strided_slice %2 {offsets = [0, 0], sizes = [8, 128], strides = [1, 1]} : vector<16x128xf32> to vector<8x128xf32>
    %c0_6 = arith.constant 0 : index
    %c0_7 = arith.constant 0 : index
    %6 = vector.load %arg8[%c0_6, %c0_7] : memref<8x256xf32, #tpu.memory_space<vmem>>, vector<8x128xf32>
    tpu.vector_store %arg8[%c0_6, %c0_7], %5 {strides = array<i32>} : memref<8x256xf32, #tpu.memory_space<vmem>>, vector<8x128xf32>,
    %7 = vector.extract_strided_slice %4 {offsets = [0, 0], sizes = [8, 128], strides = [1, 1]} : vector<16x128xf32> to vector<8x128xf32>
    %c0_8 = arith.constant 0 : index
    %c0_9 = arith.constant 0 : index
    %8 = vector.load %arg9[%c0_8, %c0_9] : memref<8x256xf32, #tpu.memory_space<vmem>>, vector<8x128xf32>
    tpu.vector_store %arg9[%c0_8, %c0_9], %7 {strides = array<i32>} : memref<8x256xf32, #tpu.memory_space<vmem>>, vector<8x128xf32>,
    %9 = vector.extract_strided_slice %2 {offsets = [8, 0], sizes = [8, 128], strides = [1, 1]} : vector<16x128xf32> to vector<8x128xf32>
    %c0_10 = arith.constant 0 : index
    %c128 = arith.constant 128 : index
    %10 = vector.load %arg8[%c0_10, %c128] : memref<8x256xf32, #tpu.memory_space<vmem>>, vector<8x128xf32>
    tpu.vector_store %arg8[%c0_10, %c128], %9 {strides = array<i32>} : memref<8x256xf32, #tpu.memory_space<vmem>>, vector<8x128xf32>,
    %11 = vector.extract_strided_slice %4 {offsets = [8, 0], sizes = [8, 128], strides = [1, 1]} : vector<16x128xf32> to vector<8x128xf32>
    %c0_11 = arith.constant 0 : index
    %c128_12 = arith.constant 128 : index
    %12 = vector.load %arg9[%c0_11, %c128_12] : memref<8x256xf32, #tpu.memory_space<vmem>>, vector<8x128xf32>
    tpu.vector_store %arg9[%c0_11, %c128_12], %11 {strides = array<i32>} : memref<8x256xf32, #tpu.memory_space<vmem>>, vector<8x128xf32>,
    %c0_13 = arith.constant 0 : index
    %c0_14 = arith.constant 0 : index
    %13 = vector.load %arg4[%c0_13, %c0_14] : memref<8x8xf32, #tpu.memory_space<vmem>>, vector<8x8xf32>
    %c0_15 = arith.constant 0 : index
    %c0_16 = arith.constant 0 : index
    %14 = vector.load %arg8[%c0_15, %c0_16] : memref<8x256xf32, #tpu.memory_space<vmem>>, vector<8x256xf32>
    %cst_17 = arith.constant dense<0.000000e+00> : vector<8x256xf32>
    %15 = tpu.matmul %13, %14, %cst_17 {dimension_numbers = #tpu.dot_dimension_numbers<[1], [0], [0], [1], [0, 0, 1, 1], [], []>} : vector<8x8xf32>, vector<8x256xf32>, vector<8x256xf32> -> vector<8x256xf32>
    %c0_18 = arith.constant 0 : index
    %c0_19 = arith.constant 0 : index
    %16 = vector.load %arg5[%c0_18, %c0_19] : memref<8x8xf32, #tpu.memory_space<vmem>>, vector<8x8xf32>
    %c0_20 = arith.constant 0 : index
    %c0_21 = arith.constant 0 : index
    %17 = vector.load %arg9[%c0_20, %c0_21] : memref<8x256xf32, #tpu.memory_space<vmem>>, vector<8x256xf32>
    %cst_22 = arith.constant dense<0.000000e+00> : vector<8x256xf32>
    %18 = tpu.matmul %16, %17, %cst_22 {dimension_numbers = #tpu.dot_dimension_numbers<[1], [0], [0], [1], [0, 0, 1, 1], [], []>} : vector<8x8xf32>, vector<8x256xf32>, vector<8x256xf32> -> vector<8x256xf32>
    %19 = arith.subf %15, %18 : vector<8x256xf32>
    %c0_23 = arith.constant 0 : index
    %c0_24 = arith.constant 0 : index
    %20 = vector.load %arg6[%c0_23, %c0_24] : memref<8x256xf32, #tpu.memory_space<vmem>>, vector<8x256xf32>
    tpu.vector_store %arg6[%c0_23, %c0_24], %19 {strides = array<i32>} : memref<8x256xf32, #tpu.memory_space<vmem>>, vector<8x256xf32>,
    %21 = arith.addf %15, %18 : vector<8x256xf32>
    %c0_25 = arith.constant 0 : index
    %c0_26 = arith.constant 0 : index
    %22 = vector.load %arg7[%c0_25, %c0_26] : memref<8x256xf32, #tpu.memory_space<vmem>>, vector<8x256xf32>
    tpu.vector_store %arg7[%c0_25, %c0_26], %21 {strides = array<i32>} : memref<8x256xf32, #tpu.memory_space<vmem>>, vector<8x256xf32>,
    return
  }
  func.func @transform_0(%arg0: i32) -> (i32, i32) {
    %c0_i32 = arith.constant 0 : i32
    %c0_i32_0 = arith.constant 0 : i32
    return %arg0, %c0_i32 : i32, i32
  }
  func.func @transform_1(%arg0: i32) -> (i32, i32) {
    %c0_i32 = arith.constant 0 : i32
    %c0_i32_0 = arith.constant 0 : i32
    %c0_i32_1 = arith.constant 0 : i32
    return %c0_i32, %c0_i32_0 : i32, i32
  }
  func.func @transform_2(%arg0: i32) -> (i32, i32) {
    %c0_i32 = arith.constant 0 : i32
    %c0_i32_0 = arith.constant 0 : i32
    %c0_i32_1 = arith.constant 0 : i32
    return %c0_i32, %c0_i32_0 : i32, i32
  }
  func.func @transform_3(%arg0: i32) -> (i32, i32) {
    %c0_i32 = arith.constant 0 : i32
    %c0_i32_0 = arith.constant 0 : i32
    %c0_i32_1 = arith.constant 0 : i32
    return %c0_i32, %c0_i32_0 : i32, i32
  }
  func.func @transform_4(%arg0: i32) -> (i32, i32) {
    %c0_i32 = arith.constant 0 : i32
    %c0_i32_0 = arith.constant 0 : i32
    %c0_i32_1 = arith.constant 0 : i32
    return %c0_i32, %c0_i32_0 : i32, i32
  }
  func.func @transform_5(%arg0: i32) -> (i32, i32) {
    %c0_i32 = arith.constant 0 : i32
    %c0_i32_0 = arith.constant 0 : i32
    return %arg0, %c0_i32 : i32, i32
  }
  func.func @transform_6(%arg0: i32) -> (i32, i32) {
    %c0_i32 = arith.constant 0 : i32
    %c0_i32_0 = arith.constant 0 : i32
    return %arg0, %c0_i32 : i32, i32
  }
}

</mosaic_0001>

<llo_original>
// kernel: tpu_custom_call.1
$region0: #{tpu_custom_call.1}
  #allocation0 [shape = 'u32[]', space=smem, size = 0x4, offset = 0x4, fixed_abs, tag = 'smem constant byte address 0x4 - core index']
  #allocation1 [shape = 'u32[144,128]{1,0:T(1,128)}', space=vmem, size = 0x12000, scoped, tag = 'internal scratch']
  #allocation2 [shape = 'f32[8,256]{1,0:T(8,128)}', space=vmem, size = 0x2000, scoped, tag = 'scratch operand']
  #allocation3 [shape = 'f32[8,256]{1,0:T(8,128)}', space=vmem, size = 0x2000, scoped, tag = 'scratch operand']
  %s0 = inlined_call_operand.hbm [shape: f32[32,32], index: 0, kind: input, shape index: {}]
  %s1 = inlined_call_operand.hbm [shape: f32[32,128], index: 1, kind: input, shape index: {}]
  %s2 = inlined_call_operand.hbm [shape: f32[32,128], index: 2, kind: input, shape index: {}]
  %s3 = inlined_call_operand.hbm [shape: f32[8,8], index: 3, kind: input, shape index: {}]
  %s4 = inlined_call_operand.hbm [shape: f32[8,8], index: 4, kind: input, shape index: {}]
  %s5 = inlined_call_operand.hbm [shape: f32[16,256], index: 5, kind: output, shape index: {0}]
  %s6 = inlined_call_operand.hbm [shape: f32[16,256], index: 6, kind: output, shape index: {1}]
  %7 = xla_tuple %s5, %s6
  %s8 = sld [smem:[#allocation0]]
  $region81: #{tpu_custom_call.1} parent=0
    _
  %s10 = ssub.s32 1, %s8
  %s11 = scalar_select 0, %s10, %s8
  $region1: #{tpu_custom_call.1} parent=0
    #allocation4 [shape = 'u8[16384]{0}', space=vmem, size = 0x4000, scoped, tag = 'input window, operand 0']
    #allocation5 [shape = 's32[2]{0}', space=sflag, size = 0x8, scoped, tag = 'scoped memory for tpu_custom_call.1']
    #allocation6 [shape = 's32[2]{0}', space=sflag, size = 0x8, scoped, tag = 'scoped memory for tpu_custom_call.1']
    #allocation7 [shape = 'u8[16384]{0}', space=vmem, size = 0x4000, scoped, tag = 'input window, operand 1, single buffered']
    #allocation8 [shape = 's32[1]{0}', space=sflag, size = 0x4, scoped, tag = 'scoped memory for tpu_custom_call.1']
    #allocation9 [shape = 'u8[16384]{0}', space=vmem, size = 0x4000, scoped, tag = 'input window, operand 2, single buffered']
    #allocation10 [shape = 'u8[4096]{0}', space=vmem, size = 0x1000, scoped, tag = 'input window, operand 3, single buffered']
    #allocation11 [shape = 's32[1]{0}', space=sflag, size = 0x4, scoped, tag = 'scoped memory for tpu_custom_call.1']
    #allocation12 [shape = 'u8[4096]{0}', space=vmem, size = 0x1000, scoped, tag = 'input window, operand 4, single buffered']
    #allocation13 [shape = 'u8[16384]{0}', space=vmem, size = 0x4000, scoped, tag = 'output window, operand 0']
    #allocation14 [shape = 'u8[16384]{0}', space=vmem, size = 0x4000, scoped, tag = 'output window, operand 1']
    #allocation15 [shape = 's32[2]{0}', space=sflag, size = 0x8, scoped, tag = 'scoped memory for tpu_custom_call.1']
    %12 = vsyncpa [#allocation5], 0
    %s13 = scalar_lea.sflag [#allocation5], 1
    %14 = vsyncpa %s13, 0
    %15 = vsyncpa [#allocation8], 0
    %16 = vsyncpa [#allocation11], 0
    %17 = vsyncpa [#allocation6], 0
    %s18 = scalar_lea.sflag [#allocation6], 1
    %19 = vsyncpa %s18, 0
    %20 = vsyncpa [#allocation15], 0
    %s21 = scalar_lea.sflag [#allocation15], 1
    %22 = vsyncpa %s21, 0
    loop: start=0, step=1, limit=4
    $region2: #{tpu_custom_call.1} parent=1 // loop_pre_header
      _
    $region3: #{tpu_custom_call.1} parent=1 // loop_header
      %s24 = sphi 0, %s28
      %p25 = scmp.ge.s32.totalorder %s24, 4
      %s34 = sphi 0, %s36
      %s37 = sphi 0, %s34
      %s38 = sphi 0, %s37
      %s54 = sphi 0, %s38
      %s58 = sphi 0, %s58
      %s60 = sphi 0, %s58
      %s61 = sphi 0, %s60
      %s75 = sphi 0, %s61
      %s79 = sphi 0, %s79
      %s81 = sphi 0, %s79
      %s82 = sphi 0, %s81
      %s96 = sphi 0, %s82
      %s100 = sphi 0, %s100
      %s102 = sphi 0, %s100
      %s103 = sphi 0, %s102
      %s117 = sphi 0, %s103
      %s121 = sphi 0, %s121
      %s123 = sphi 0, %s121
      %s124 = sphi 0, %s123
      %s138 = sphi 0, %s124
      %s144 = sphi 0, %s146
      %s147 = sphi 0, %s144
      %s148 = sphi 0, %s147
      %s164 = sphi 0, %s148
      %s170 = sphi 0, %s172
      %s173 = sphi 0, %s170
      %s174 = sphi 0, %s173
      %s190 = sphi 0, %s174
    $region4: #{tpu_custom_call.1} parent=1 // loop_header_branch
      %27 = sbr.rel (%p25) target = $region8
    $region5: #{tpu_custom_call.1} parent=1 // loop_body
      %s29 = ssub.s32 %s24, 1
      %s30 = ssub.s32 %s24, 2
      %s31 = sadd.s32 %s24, 1
      %s32 = ssub.s32 %s24, %s31
      %p33 = scmp.eq.s32.totalorder %s32, 0
      %s35 = sadd.s32 %s34, 1
      %s36 = scalar_select %p33, %s34, %s35
      %p39 = pneg %p33
      %p40 = scmp.eq.s32.totalorder %s24, 1
      %p41 = por %p39, %p40
      %p42 = scmp.ne.s32.totalorder %s34, %s37
      %p43 = scmp.eq.s32.totalorder %s24, 0
      %p44 = por %p42, %p43
      %p45 = scmp.ne.s32.totalorder %s34, %s37
      %p46 = scmp.eq.s32.totalorder %s29, 1
      %p47 = por %p45, %p46
      %p48 = scmp.ne.s32.totalorder %s37, %s38
      %p49 = scmp.eq.s32.totalorder %s29, 0
      %p50 = por %p48, %p49
      %p51 = scmp.ne.s32.totalorder %s37, %s38
      %p52 = scmp.eq.s32.totalorder %s30, 1
      %p53 = por %p51, %p52
      %p55 = scmp.ne.s32.totalorder %s38, %s54
      %p56 = scmp.eq.s32.totalorder %s30, 0
      %p57 = por %p55, %p56
      %s59 = sadd.s32 %s58, 1
      %p62 = scmp.eq.s32.totalorder %s24, 1
      %p63 = scmp.ne.s32.totalorder %s58, %s60
      %p64 = scmp.eq.s32.totalorder %s24, 0
      %p65 = por %p63, %p64
      %p66 = scmp.ne.s32.totalorder %s58, %s60
      %p67 = scmp.eq.s32.totalorder %s29, 1
      %p68 = por %p66, %p67
      %p69 = scmp.ne.s32.totalorder %s60, %s61
      %p70 = scmp.eq.s32.totalorder %s29, 0
      %p71 = por %p69, %p70
      %p72 = scmp.ne.s32.totalorder %s60, %s61
      %p73 = scmp.eq.s32.totalorder %s30, 1
      %p74 = por %p72, %p73
      %p76 = scmp.ne.s32.totalorder %s61, %s75
      %p77 = scmp.eq.s32.totalorder %s30, 0
      %p78 = por %p76, %p77
      %s80 = sadd.s32 %s79, 1
      %p83 = scmp.eq.s32.totalorder %s24, 1
      %p84 = scmp.ne.s32.totalorder %s79, %s81
      %p85 = scmp.eq.s32.totalorder %s24, 0
      %p86 = por %p84, %p85
      %p87 = scmp.ne.s32.totalorder %s79, %s81
      %p88 = scmp.eq.s32.totalorder %s29, 1
      %p89 = por %p87, %p88
      %p90 = scmp.ne.s32.totalorder %s81, %s82
      %p91 = scmp.eq.s32.totalorder %s29, 0
      %p92 = por %p90, %p91
      %p93 = scmp.ne.s32.totalorder %s81, %s82
      %p94 = scmp.eq.s32.totalorder %s30, 1
      %p95 = por %p93, %p94
      %p97 = scmp.ne.s32.totalorder %s82, %s96
      %p98 = scmp.eq.s32.totalorder %s30, 0
      %p99 = por %p97, %p98
      %s101 = sadd.s32 %s100, 1
      %p104 = scmp.eq.s32.totalorder %s24, 1
      %p105 = scmp.ne.s32.totalorder %s100, %s102
      %p106 = scmp.eq.s32.totalorder %s24, 0
      %p107 = por %p105, %p106
      %p108 = scmp.ne.s32.totalorder %s100, %s102
      %p109 = scmp.eq.s32.totalorder %s29, 1
      %p110 = por %p108, %p109
      %p111 = scmp.ne.s32.totalorder %s102, %s103
      %p112 = scmp.eq.s32.totalorder %s29, 0
      %p113 = por %p111, %p112
      %p114 = scmp.ne.s32.totalorder %s102, %s103
      %p115 = scmp.eq.s32.totalorder %s30, 1
      %p116 = por %p114, %p115
      %p118 = scmp.ne.s32.totalorder %s103, %s117
      %p119 = scmp.eq.s32.totalorder %s30, 0
      %p120 = por %p118, %p119
      %s122 = sadd.s32 %s121, 1
      %p125 = scmp.eq.s32.totalorder %s24, 1
      %p126 = scmp.ne.s32.totalorder %s121, %s123
      %p127 = scmp.eq.s32.totalorder %s24, 0
      %p128 = por %p126, %p127
      %p129 = scmp.ne.s32.totalorder %s121, %s123
      %p130 = scmp.eq.s32.totalorder %s29, 1
      %p131 = por %p129, %p130
      %p132 = scmp.ne.s32.totalorder %s123, %s124
      %p133 = scmp.eq.s32.totalorder %s29, 0
      %p134 = por %p132, %p133
      %p135 = scmp.ne.s32.totalorder %s123, %s124
      %p136 = scmp.eq.s32.totalorder %s30, 1
      %p137 = por %p135, %p136
      %p139 = scmp.ne.s32.totalorder %s124, %s138
      %p140 = scmp.eq.s32.totalorder %s30, 0
      %p141 = por %p139, %p140
      %s142 = ssub.s32 %s24, %s31
      %p143 = scmp.eq.s32.totalorder %s142, 0
      %s145 = sadd.s32 %s144, 1
      %s146 = scalar_select %p143, %s144, %s145
      %p149 = pneg %p143
      %p150 = scmp.eq.s32.totalorder %s24, 1
      %p151 = por %p149, %p150
      %p152 = scmp.ne.s32.totalorder %s144, %s147
      %p153 = scmp.eq.s32.totalorder %s24, 0
      %p154 = por %p152, %p153
      %p155 = scmp.ne.s32.totalorder %s144, %s147
      %p156 = scmp.eq.s32.totalorder %s29, 1
      %p157 = por %p155, %p156
      %p158 = scmp.ne.s32.totalorder %s147, %s148
      %p159 = scmp.eq.s32.totalorder %s29, 0
      %p160 = por %p158, %p159
      %p161 = scmp.ne.s32.totalorder %s147, %s148
      %p162 = scmp.eq.s32.totalorder %s30, 1
      %p163 = por %p161, %p162
      %p165 = scmp.ne.s32.totalorder %s148, %s164
      %p166 = scmp.eq.s32.totalorder %s30, 0
      %p167 = por %p165, %p166
      %s168 = ssub.s32 %s24, %s31
      %p169 = scmp.eq.s32.totalorder %s168, 0
      %s171 = sadd.s32 %s170, 1
      %s172 = scalar_select %p169, %s170, %s171
      %p175 = pneg %p169
      %p176 = scmp.eq.s32.totalorder %s24, 1
      %p177 = por %p175, %p176
      %p178 = scmp.ne.s32.totalorder %s170, %s173
      %p179 = scmp.eq.s32.totalorder %s24, 0
      %p180 = por %p178, %p179
      %p181 = scmp.ne.s32.totalorder %s170, %s173
      %p182 = scmp.eq.s32.totalorder %s29, 1
      %p183 = por %p181, %p182
      %p184 = scmp.ne.s32.totalorder %s173, %s174
      %p185 = scmp.eq.s32.totalorder %s29, 0
      %p186 = por %p184, %p185
      %p187 = scmp.ne.s32.totalorder %s173, %s174
      %p188 = scmp.eq.s32.totalorder %s30, 1
      %p189 = por %p187, %p188
      %p191 = scmp.ne.s32.totalorder %s174, %s190
      %p192 = scmp.eq.s32.totalorder %s30, 0
      %p193 = por %p191, %p192
      %p194 = scmp.le.s32.totalorder 1, %s24
      %p195 = scmp.lt.s32.totalorder %s24, 3
      %p196 = pnand %p194, %p195
      %p197 = pneg %p196
      // Predicated region
      $region9: #{tpu_custom_call.1} parent=5 // pred_check
        _
      $region10: #{tpu_custom_call.1} parent=5 // pred_check_branch
        %199 = sbr.rel (%p196) target = $region12
      $region11: #{tpu_custom_call.1} parent=5 // pred_region
        %s200 = ssub.s32 %s24, 1
        // Predicated region
        $region13: #{tpu_custom_call.1} parent=11 // pred_check
          %p201 = pneg %p71
        $region14: #{tpu_custom_call.1} parent=11 // pred_check_branch
          %203 = sbr.rel (%p201) target = $region16
        $region15: #{tpu_custom_call.1} parent=11 // pred_region
          %s205 = ssub.s32 512, 512
          %206 = vsyncadd [#allocation8], %s205
          %s207 = sshll.u32 [#allocation7], 4
          %s208 = int_to_ptr.vmem [resolvable:$true] %s207
          %213 = dma.hbm_to_vmem [thread:$0]  %s1, 512, %s208, [#allocation8], 128, 128, 8
        $region16: #{tpu_custom_call.1} parent=11 // pred_fallthru
          _
        // Predicated region
        $region17: #{tpu_custom_call.1} parent=11 // pred_check
          %p214 = pneg %p92
        $region18: #{tpu_custom_call.1} parent=11 // pred_check_branch
          %216 = sbr.rel (%p214) target = $region20
        $region19: #{tpu_custom_call.1} parent=11 // pred_region
          %s218 = ssub.s32 512, 512
          %219 = vsyncadd [#allocation8], %s218
          %s220 = sshll.u32 [#allocation9], 4
          %s221 = int_to_ptr.vmem [resolvable:$true] %s220
          %226 = dma.hbm_to_vmem [thread:$0]  %s2, 512, %s221, [#allocation8], 128, 128, 8
        $region20: #{tpu_custom_call.1} parent=11 // pred_fallthru
          _
        // Predicated region
        $region21: #{tpu_custom_call.1} parent=11 // pred_check
          %p227 = pneg %p113
        $region22: #{tpu_custom_call.1} parent=11 // pred_check_branch
          %229 = sbr.rel (%p227) target = $region24
        $region23: #{tpu_custom_call.1} parent=11 // pred_region
          %s231 = ssub.s32 128, 128
          %232 = vsyncadd [#allocation11], %s231
          %s234 = sshll.u32 [#allocation10], 4
          %s235 = int_to_ptr.vmem [resolvable:$true] %s234
          %237 = dma.hbm_to_vmem [thread:$0]  %s3, 128, %s235, [#allocation11]
        $region24: #{tpu_custom_call.1} parent=11 // pred_fallthru
          _
        // Predicated region
        $region25: #{tpu_custom_call.1} parent=11 // pred_check
          %p238 = pneg %p134
        $region26: #{tpu_custom_call.1} parent=11 // pred_check_branch
          %240 = sbr.rel (%p238) target = $region28
        $region27: #{tpu_custom_call.1} parent=11 // pred_region
          %s242 = ssub.s32 128, 128
          %243 = vsyncadd [#allocation11], %s242
          %s245 = sshll.u32 [#allocation12], 4
          %s246 = int_to_ptr.vmem [resolvable:$true] %s245
          %248 = dma.hbm_to_vmem [thread:$0]  %s4, 128, %s246, [#allocation11]
        $region28: #{tpu_custom_call.1} parent=11 // pred_fallthru
          _
      $region12: #{tpu_custom_call.1} parent=5 // pred_fallthru
        _
      %p249 = scmp.lt.s32.totalorder %s24, 2
      // Predicated region
      $region29: #{tpu_custom_call.1} parent=5 // pred_check
        %p250 = pneg %p249
      $region30: #{tpu_custom_call.1} parent=5 // pred_check_branch
        %252 = sbr.rel (%p250) target = $region32
      $region31: #{tpu_custom_call.1} parent=5 // pred_region
        // Predicated region
        $region33: #{tpu_custom_call.1} parent=31 // pred_check
          %p253 = pneg %p44
        $region34: #{tpu_custom_call.1} parent=31 // pred_check_branch
          %255 = sbr.rel (%p253) target = $region36
        $region35: #{tpu_custom_call.1} parent=31 // pred_region
          %s256 = sand.u32 %s34, 1
          %s257 = scalar_lea.sflag [#allocation5], %s256
          %s258 = sand.u32 %s34, 1
          %s259 = smul.addr %s258, 16
          %s260 = scalar_lea.vmem [#allocation4], %s259
          %s261 = smul.u32 2, %s24
          %s263 = ssub.s32 256, 256
          %264 = vsyncadd %s257, %s263
          %s265 = smul.addr %s261, 128
          %s266 = scalar_lea.hbm %s0, %s265
          %s267 = sshll.u32 %s260, 4
          %s268 = int_to_ptr.vmem [resolvable:$true] %s267
          %273 = dma.hbm_to_vmem [thread:$0]  %s266, 256, %s268, %s257, 128, 128, 8
        $region36: #{tpu_custom_call.1} parent=31 // pred_fallthru
          _
      $region32: #{tpu_custom_call.1} parent=5 // pred_fallthru
        _
      %p274 = scmp.le.s32.totalorder 1, %s24
      %p275 = scmp.lt.s32.totalorder %s24, 3
      %p276 = pnand %p274, %p275
      %p277 = pneg %p276
      // Predicated region
      $region37: #{tpu_custom_call.1} parent=5 // pred_check
        _
      $region38: #{tpu_custom_call.1} parent=5 // pred_check_branch
        %279 = sbr.rel (%p276) target = $region40
      $region39: #{tpu_custom_call.1} parent=5 // pred_region
        %s280 = ssub.s32 %s24, 1
        %s281 = sand.u32 %s37, 1
        %s282 = scalar_lea.sflag [#allocation5], %s281
        %s283 = sand.u32 %s37, 1
        %s284 = smul.addr %s283, 16
        %s285 = scalar_lea.vmem [#allocation4], %s284
        // Predicated region
        $region41: #{tpu_custom_call.1} parent=39 // pred_check
          %p286 = pneg %p50
        $region42: #{tpu_custom_call.1} parent=39 // pred_check_branch
          %288 = sbr.rel (%p286) target = $region44
        $region43: #{tpu_custom_call.1} parent=39 // pred_region
          %289 = dma.done %s282, 256
        $region44: #{tpu_custom_call.1} parent=39 // pred_fallthru
          _
        // Predicated region
        $region45: #{tpu_custom_call.1} parent=39 // pred_check
          %p290 = pneg %p71
        $region46: #{tpu_custom_call.1} parent=39 // pred_check_branch
          %292 = sbr.rel (%p290) target = $region48
        $region47: #{tpu_custom_call.1} parent=39 // pred_region
          %293 = dma.done [#allocation8], 512
        $region48: #{tpu_custom_call.1} parent=39 // pred_fallthru
          _
        // Predicated region
        $region49: #{tpu_custom_call.1} parent=39 // pred_check
          %p294 = pneg %p92
        $region50: #{tpu_custom_call.1} parent=39 // pred_check_branch
          %296 = sbr.rel (%p294) target = $region52
        $region51: #{tpu_custom_call.1} parent=39 // pred_region
          %297 = dma.done [#allocation8], 512
        $region52: #{tpu_custom_call.1} parent=39 // pred_fallthru
          _
        // Predicated region
        $region53: #{tpu_custom_call.1} parent=39 // pred_check
          %p298 = pneg %p113
        $region54: #{tpu_custom_call.1} parent=39 // pred_check_branch
          %300 = sbr.rel (%p298) target = $region56
        $region55: #{tpu_custom_call.1} parent=39 // pred_region
          %301 = dma.done [#allocation11], 128
        $region56: #{tpu_custom_call.1} parent=39 // pred_fallthru
          _
        // Predicated region
        $region57: #{tpu_custom_call.1} parent=39 // pred_check
          %p302 = pneg %p134
        $region58: #{tpu_custom_call.1} parent=39 // pred_check_branch
          %304 = sbr.rel (%p302) target = $region60
        $region59: #{tpu_custom_call.1} parent=39 // pred_region
          %305 = dma.done [#allocation11], 128
        $region60: #{tpu_custom_call.1} parent=39 // pred_fallthru
          _
        %s306 = sand.u32 %s37, 1
        %s307 = scalar_lea.sflag [#allocation5], %s306
        %s308 = sand.u32 %s37, 1
        %s309 = smul.addr %s308, 16
        %s310 = scalar_lea.vmem [#allocation4], %s309
        %p311 = pneg %p50
        %p312 = pneg %p47
        %p313 = pneg %p71
        %p314 = pneg %p68
        %p315 = pneg %p92
        %p316 = pneg %p89
        %p317 = pneg %p113
        %p318 = pneg %p110
        %p319 = pneg %p134
        %p320 = pneg %p131
        %p321 = pneg %p160
        %p322 = pneg %p157
        %s323 = sand.u32 %s147, 1
        %s324 = scalar_lea.sflag [#allocation6], %s323
        %s325 = sand.u32 %s147, 1
        %s326 = smul.addr %s325, 16
        %s327 = scalar_lea.vmem [#allocation13], %s326
        %p328 = pneg %p186
        %p329 = pneg %p183
        %s330 = sand.u32 %s173, 1
        %s331 = scalar_lea.sflag [#allocation15], %s330
        %s332 = sand.u32 %s173, 1
        %s333 = smul.addr %s332, 16
        %s334 = scalar_lea.vmem [#allocation14], %s333
        %s335 = smul.u32 2, %s29
        %v336 = vld [vmem:[%s285] sm:$0xff]
        %v337 = vld [vmem:[%s285 + $0x8] sm:$0xff]
        %v338 = vld [vmem:[#allocation7] sm:$0xff]
        %v339 = vld [vmem:[#allocation7 + $0x8] sm:$0xff]
        %v340 = vld [vmem:[#allocation7 + $0x10] sm:$0xff]
        %v341 = vld [vmem:[#allocation7 + $0x18] sm:$0xff]
        %vm342 = vcmask 261120
        %v344 = vsel %vm342, %v336, 0
        %v347 = vsel %vm342, %v337, 0
        %349 = vmatprep.subr.mxu0 0.0
        %350 = vmatpush1.msra.mxu0 0.0
        %351 = vmatprep.subr.mxu0 0.0
        %352 = vmatpush1.msra.mxu0 0.0
        %353 = vmatprep.subr.mxu0 0.0
        %354 = vmatpush1.msra.mxu0 0.0
        %355 = vmatprep.subr.mxu0 0.0
        %356 = vmatpush1.msra.mxu0 0.0
        %357 = vmatprep.subr.mxu0 0.0
        %358 = vmatpush1.msra.mxu0 0.0
        %359 = vmatprep.subr.mxu0 0.0
        %360 = vmatpush1.msra.mxu0 0.0
        %361 = vmatprep.subr.mxu0 0.0
        %362 = vmatpush1.msra.mxu0 0.0
        %363 = vmatprep.subr.mxu0 0.0
        %364 = vmatpush1.msra.mxu0 0.0
        %365 = vmatprep.subr.mxu0 0.0
        %366 = vmatpush1.msra.mxu0 0.0
        %367 = vmatprep.subr.mxu0 0.0
        %368 = vmatpush1.msra.mxu0 0.0
        %369 = vmatprep.subr.mxu0 0.0
        %370 = vmatpush1.msra.mxu0 0.0
        %371 = vmatprep.subr.mxu0 0.0
        %372 = vmatpush1.msra.mxu0 0.0
        %373 = vmatprep.subr.mxu0 0.0
        %374 = vmatpush1.msra.mxu0 %v341
        %375 = vmatprep.subr.mxu0 0.0
        %376 = vmatpush1.msra.mxu0 %v340
        %377 = vmatprep.subr.mxu0 0.0
        %378 = vmatpush1.msra.mxu0 %v339
        %379 = vmatprep.subr.mxu0 0.0
        %380 = vmatpush1.msra.mxu0 %v338
        %381 = vmatprep.subr.mxu0 0.0
        %382 = vmatpush2.msra.mxu0 0.0
        %383 = vmatprep.subr.mxu0 0.0
        %384 = vmatpush2.msra.mxu0 0.0
        %385 = vmatprep.subr.mxu0 0.0
        %386 = vmatpush2.msra.mxu0 0.0
        %387 = vmatprep.subr.mxu0 0.0
        %388 = vmatpush2.msra.mxu0 0.0
        %389 = vmatprep.subr.mxu0 0.0
        %390 = vmatpush2.msra.mxu0 0.0
        %391 = vmatprep.subr.mxu0 0.0
        %392 = vmatpush2.msra.mxu0 0.0
        %393 = vmatprep.subr.mxu0 0.0
        %394 = vmatpush2.msra.mxu0 0.0
        %395 = vmatprep.subr.mxu0 0.0
        %396 = vmatpush2.msra.mxu0 0.0
        %397 = vmatprep.subr.mxu0 0.0
        %398 = vmatpush2.msra.mxu0 0.0
        %399 = vmatprep.subr.mxu0 0.0
        %400 = vmatpush2.msra.mxu0 0.0
        %401 = vmatprep.subr.mxu0 0.0
        %402 = vmatpush2.msra.mxu0 0.0
        %403 = vmatprep.subr.mxu0 0.0
        %404 = vmatpush2.msra.mxu0 0.0
        %405 = vmatprep.subr.mxu0 0.0
        %406 = vmatpush2.msra.mxu0 0.0
        %407 = vmatprep.subr.mxu0 0.0
        %408 = vmatpush2.msra.mxu0 0.0
        %409 = vmatprep.subr.mxu0 0.0
        %410 = vmatpush2.msra.mxu0 0.0
        %411 = vmatprep.subr.mxu0 0.0
        %412 = vmatpush2.msra.mxu0 0.0
        %413 = vmatprep.mubr.f32.mxu0 0.0
        %414 = vmatmul.mubr.f32.gmra.mxu0 %v344
        %v415 = vpop.f32.mrf.mxu0
        %v416 = vadd.f32 0.0, %v415
        %v417 = vpop.f32.mrf.mxu0
        %418 = vmatprep.mubr.f32.mxu0 0.0
        %419 = vmatmul.mubr.f32.gmra.mxu0 %v347
        %v420 = vpop.f32.mrf.mxu0
        %v421 = vadd.f32 0.0, %v420
        %v422 = vpop.f32.mrf.mxu0
        %423 = vdwg.mxu0
        %v424 = vld [vmem:[#allocation9] sm:$0xff]
        %v425 = vld [vmem:[#allocation9 + $0x8] sm:$0xff]
        %v426 = vld [vmem:[#allocation9 + $0x10] sm:$0xff]
        %v427 = vld [vmem:[#allocation9 + $0x18] sm:$0xff]
        %428 = vmatprep.subr.mxu0 0.0
        %429 = vmatpush1.msra.mxu0 0.0
        %430 = vmatprep.subr.mxu0 0.0
        %431 = vmatpush1.msra.mxu0 0.0
        %432 = vmatprep.subr.mxu0 0.0
        %433 = vmatpush1.msra.mxu0 0.0
        %434 = vmatprep.subr.mxu0 0.0
        %435 = vmatpush1.msra.mxu0 0.0
        %436 = vmatprep.subr.mxu0 0.0
        %437 = vmatpush1.msra.mxu0 0.0
        %438 = vmatprep.subr.mxu0 0.0
        %439 = vmatpush1.msra.mxu0 0.0
        %440 = vmatprep.subr.mxu0 0.0
        %441 = vmatpush1.msra.mxu0 0.0
        %442 = vmatprep.subr.mxu0 0.0
        %443 = vmatpush1.msra.mxu0 0.0
        %444 = vmatprep.subr.mxu0 0.0
        %445 = vmatpush1.msra.mxu0 0.0
        %446 = vmatprep.subr.mxu0 0.0
        %447 = vmatpush1.msra.mxu0 0.0
        %448 = vmatprep.subr.mxu0 0.0
        %449 = vmatpush1.msra.mxu0 0.0
        %450 = vmatprep.subr.mxu0 0.0
        %451 = vmatpush1.msra.mxu0 0.0
        %452 = vmatprep.subr.mxu0 0.0
        %453 = vmatpush1.msra.mxu0 %v427
        %454 = vmatprep.subr.mxu0 0.0
        %455 = vmatpush1.msra.mxu0 %v426
        %456 = vmatprep.subr.mxu0 0.0
        %457 = vmatpush1.msra.mxu0 %v425
        %458 = vmatprep.subr.mxu0 0.0
        %459 = vmatpush1.msra.mxu0 %v424
        %460 = vmatprep.subr.mxu0 0.0
        %461 = vmatpush2.msra.mxu0 0.0
        %462 = vmatprep.subr.mxu0 0.0
        %463 = vmatpush2.msra.mxu0 0.0
        %464 = vmatprep.subr.mxu0 0.0
        %465 = vmatpush2.msra.mxu0 0.0
        %466 = vmatprep.subr.mxu0 0.0
        %467 = vmatpush2.msra.mxu0 0.0
        %468 = vmatprep.subr.mxu0 0.0
        %469 = vmatpush2.msra.mxu0 0.0
        %470 = vmatprep.subr.mxu0 0.0
        %471 = vmatpush2.msra.mxu0 0.0
        %472 = vmatprep.subr.mxu0 0.0
        %473 = vmatpush2.msra.mxu0 0.0
        %474 = vmatprep.subr.mxu0 0.0
        %475 = vmatpush2.msra.mxu0 0.0
        %476 = vmatprep.subr.mxu0 0.0
        %477 = vmatpush2.msra.mxu0 0.0
        %478 = vmatprep.subr.mxu0 0.0
        %479 = vmatpush2.msra.mxu0 0.0
        %480 = vmatprep.subr.mxu0 0.0
        %481 = vmatpush2.msra.mxu0 0.0
        %482 = vmatprep.subr.mxu0 0.0
        %483 = vmatpush2.msra.mxu0 0.0
        %484 = vmatprep.subr.mxu0 0.0
        %485 = vmatpush2.msra.mxu0 0.0
        %486 = vmatprep.subr.mxu0 0.0
        %487 = vmatpush2.msra.mxu0 0.0
        %488 = vmatprep.subr.mxu0 0.0
        %489 = vmatpush2.msra.mxu0 0.0
        %490 = vmatprep.subr.mxu0 0.0
        %491 = vmatpush2.msra.mxu0 0.0
        %492 = vmatprep.mubr.f32.mxu0 0.0
        %493 = vmatmul.mubr.f32.gmra.mxu0 %v344
        %v494 = vpop.f32.mrf.mxu0
        %v495 = vadd.f32 0.0, %v494
        %v496 = vpop.f32.mrf.mxu0
        %497 = vmatprep.mubr.f32.mxu0 0.0
        %498 = vmatmul.mubr.f32.gmra.mxu0 %v347
        %v499 = vpop.f32.mrf.mxu0
        %v500 = vadd.f32 0.0, %v499
        %v501 = vpop.f32.mrf.mxu0
        %502 = vdwg.mxu0
        %503 = vst [vmem:[#allocation2] sm:$0xff] %v416
        %504 = vst [vmem:[#allocation3] sm:$0xff] %v495
        %505 = vst [vmem:[#allocation2 + $0x8] sm:$0xff] %v421
        %506 = vst [vmem:[#allocation3 + $0x8] sm:$0xff] %v500
        %v507 = vld [vmem:[#allocation10] sm:$0xff]
        %v508 = vld [vmem:[#allocation2] sm:$0xff]
        %v509 = vld [vmem:[#allocation2 + $0x8] sm:$0xff]
        %vm510 = vcmask 64512
        %v512 = vsel %vm510, %v507, 0
        %514 = vmatprep.subr.mxu0 0.0
        %515 = vmatpush1.msra.mxu0 0.0
        %516 = vmatprep.subr.mxu0 0.0
        %517 = vmatpush1.msra.mxu0 0.0
        %518 = vmatprep.subr.mxu0 0.0
        %519 = vmatpush1.msra.mxu0 0.0
        %520 = vmatprep.subr.mxu0 0.0
        %521 = vmatpush1.msra.mxu0 0.0
        %522 = vmatprep.subr.mxu0 0.0
        %523 = vmatpush1.msra.mxu0 0.0
        %524 = vmatprep.subr.mxu0 0.0
        %525 = vmatpush1.msra.mxu0 0.0
        %526 = vmatprep.subr.mxu0 0.0
        %527 = vmatpush1.msra.mxu0 0.0
        %528 = vmatprep.subr.mxu0 0.0
        %529 = vmatpush1.msra.mxu0 0.0
        %530 = vmatprep.subr.mxu0 0.0
        %531 = vmatpush1.msra.mxu0 0.0
        %532 = vmatprep.subr.mxu0 0.0
        %533 = vmatpush1.msra.mxu0 0.0
        %534 = vmatprep.subr.mxu0 0.0
        %535 = vmatpush1.msra.mxu0 0.0
        %536 = vmatprep.subr.mxu0 0.0
        %537 = vmatpush1.msra.mxu0 0.0
        %538 = vmatprep.subr.mxu0 0.0
        %539 = vmatpush1.msra.mxu0 0.0
        %540 = vmatprep.subr.mxu0 0.0
        %541 = vmatpush1.msra.mxu0 0.0
        %542 = vmatprep.subr.mxu0 0.0
        %543 = vmatpush1.msra.mxu0 0.0
        %544 = vmatprep.subr.mxu0 %v509
        %545 = vmatpush1.msra.mxu0 %v508
        %546 = vmatprep.subr.mxu0 0.0
        %547 = vmatpush2.msra.mxu0 0.0
        %548 = vmatprep.subr.mxu0 0.0
        %549 = vmatpush2.msra.mxu0 0.0
        %550 = vmatprep.subr.mxu0 0.0
        %551 = vmatpush2.msra.mxu0 0.0
        %552 = vmatprep.subr.mxu0 0.0
        %553 = vmatpush2.msra.mxu0 0.0
        %554 = vmatprep.subr.mxu0 0.0
        %555 = vmatpush2.msra.mxu0 0.0
        %556 = vmatprep.subr.mxu0 0.0
        %557 = vmatpush2.msra.mxu0 0.0
        %558 = vmatprep.subr.mxu0 0.0
        %559 = vmatpush2.msra.mxu0 0.0
        %560 = vmatprep.subr.mxu0 0.0
        %561 = vmatpush2.msra.mxu0 0.0
        %562 = vmatprep.subr.mxu0 0.0
        %563 = vmatpush2.msra.mxu0 0.0
        %564 = vmatprep.subr.mxu0 0.0
        %565 = vmatpush2.msra.mxu0 0.0
        %566 = vmatprep.subr.mxu0 0.0
        %567 = vmatpush2.msra.mxu0 0.0
        %568 = vmatprep.subr.mxu0 0.0
        %569 = vmatpush2.msra.mxu0 0.0
        %570 = vmatprep.subr.mxu0 0.0
        %571 = vmatpush2.msra.mxu0 0.0
        %572 = vmatprep.subr.mxu0 0.0
        %573 = vmatpush2.msra.mxu0 0.0
        %574 = vmatprep.subr.mxu0 0.0
        %575 = vmatpush2.msra.mxu0 0.0
        %576 = vmatprep.subr.mxu0 0.0
        %577 = vmatpush2.msra.mxu0 0.0
        %578 = vmatprep.mubr.f32.mxu0 0.0
        %579 = vmatmul.mubr.f32.gmra.mxu0 %v512
        %v580 = vpop.f32.mrf.mxu0
        %v581 = vadd.f32 0.0, %v580
        %v582 = vpop.f32.mrf.mxu0
        %v583 = vadd.f32 0.0, %v582
        %584 = vdwg.mxu0
        %v585 = vld [vmem:[#allocation12] sm:$0xff]
        %v586 = vld [vmem:[#allocation3] sm:$0xff]
        %v587 = vld [vmem:[#allocation3 + $0x8] sm:$0xff]
        %v589 = vsel %vm510, %v585, 0
        %591 = vmatprep.subr.mxu0 0.0
        %592 = vmatpush1.msra.mxu0 0.0
        %593 = vmatprep.subr.mxu0 0.0
        %594 = vmatpush1.msra.mxu0 0.0
        %595 = vmatprep.subr.mxu0 0.0
        %596 = vmatpush1.msra.mxu0 0.0
        %597 = vmatprep.subr.mxu0 0.0
        %598 = vmatpush1.msra.mxu0 0.0
        %599 = vmatprep.subr.mxu0 0.0
        %600 = vmatpush1.msra.mxu0 0.0
        %601 = vmatprep.subr.mxu0 0.0
        %602 = vmatpush1.msra.mxu0 0.0
        %603 = vmatprep.subr.mxu0 0.0
        %604 = vmatpush1.msra.mxu0 0.0
        %605 = vmatprep.subr.mxu0 0.0
        %606 = vmatpush1.msra.mxu0 0.0
        %607 = vmatprep.subr.mxu0 0.0
        %608 = vmatpush1.msra.mxu0 0.0
        %609 = vmatprep.subr.mxu0 0.0
        %610 = vmatpush1.msra.mxu0 0.0
        %611 = vmatprep.subr.mxu0 0.0
        %612 = vmatpush1.msra.mxu0 0.0
        %613 = vmatprep.subr.mxu0 0.0
        %614 = vmatpush1.msra.mxu0 0.0
        %615 = vmatprep.subr.mxu0 0.0
        %616 = vmatpush1.msra.mxu0 0.0
        %617 = vmatprep.subr.mxu0 0.0
        %618 = vmatpush1.msra.mxu0 0.0
        %619 = vmatprep.subr.mxu0 0.0
        %620 = vmatpush1.msra.mxu0 0.0
        %621 = vmatprep.subr.mxu0 %v587
        %622 = vmatpush1.msra.mxu0 %v586
        %623 = vmatprep.subr.mxu0 0.0
        %624 = vmatpush2.msra.mxu0 0.0
        %625 = vmatprep.subr.mxu0 0.0
        %626 = vmatpush2.msra.mxu0 0.0
        %627 = vmatprep.subr.mxu0 0.0
        %628 = vmatpush2.msra.mxu0 0.0
        %629 = vmatprep.subr.mxu0 0.0
        %630 = vmatpush2.msra.mxu0 0.0
        %631 = vmatprep.subr.mxu0 0.0
        %632 = vmatpush2.msra.mxu0 0.0
        %633 = vmatprep.subr.mxu0 0.0
        %634 = vmatpush2.msra.mxu0 0.0
        %635 = vmatprep.subr.mxu0 0.0
        %636 = vmatpush2.msra.mxu0 0.0
        %637 = vmatprep.subr.mxu0 0.0
        %638 = vmatpush2.msra.mxu0 0.0
        %639 = vmatprep.subr.mxu0 0.0
        %640 = vmatpush2.msra.mxu0 0.0
        %641 = vmatprep.subr.mxu0 0.0
        %642 = vmatpush2.msra.mxu0 0.0
        %643 = vmatprep.subr.mxu0 0.0
        %644 = vmatpush2.msra.mxu0 0.0
        %645 = vmatprep.subr.mxu0 0.0
        %646 = vmatpush2.msra.mxu0 0.0
        %647 = vmatprep.subr.mxu0 0.0
        %648 = vmatpush2.msra.mxu0 0.0
        %649 = vmatprep.subr.mxu0 0.0
        %650 = vmatpush2.msra.mxu0 0.0
        %651 = vmatprep.subr.mxu0 0.0
        %652 = vmatpush2.msra.mxu0 0.0
        %653 = vmatprep.subr.mxu0 0.0
        %654 = vmatpush2.msra.mxu0 0.0
        %655 = vmatprep.mubr.f32.mxu0 0.0
        %656 = vmatmul.mubr.f32.gmra.mxu0 %v589
        %v657 = vpop.f32.mrf.mxu0
        %v658 = vadd.f32 0.0, %v657
        %v659 = vpop.f32.mrf.mxu0
        %v660 = vadd.f32 0.0, %v659
        %661 = vdwg.mxu0
        %v662 = vsub.f32 %v581, %v658
        %v663 = vsub.f32 %v583, %v660
        %664 = vst [vmem:[%s327] sm:$0xff] %v662
        %665 = vst [vmem:[%s327 + $0x8] sm:$0xff] %v663
        %v666 = vadd.f32 %v581, %v658
        %v667 = vadd.f32 %v583, %v660
        %668 = vst [vmem:[%s334] sm:$0xff] %v666
        %669 = vst [vmem:[%s334 + $0x8] sm:$0xff] %v667
        %s670 = sand.u32 %s147, 1
        %s671 = scalar_lea.sflag [#allocation6], %s670
        %s672 = sand.u32 %s147, 1
        %s673 = smul.addr %s672, 16
        %s674 = scalar_lea.vmem [#allocation13], %s673
        %s675 = sand.u32 %s173, 1
        %s676 = scalar_lea.sflag [#allocation15], %s675
        %s677 = sand.u32 %s173, 1
        %s678 = smul.addr %s677, 16
        %s679 = scalar_lea.vmem [#allocation14], %s678
        // Predicated region
        $region61: #{tpu_custom_call.1} parent=39 // pred_check
          %p680 = pneg %p157
        $region62: #{tpu_custom_call.1} parent=39 // pred_check_branch
          %682 = sbr.rel (%p680) target = $region64
        $region63: #{tpu_custom_call.1} parent=39 // pred_region
          %s684 = ssub.s32 256, 256
          %685 = vsyncadd %s671, %s684
          %s686 = smul.addr %s29, 2
          %s687 = smul.addr %s686, 128
          %s688 = scalar_lea.hbm %s5, %s687
          %s690 = sshll.u32 %s674, 4
          %s691 = int_to_ptr.vmem [resolvable:$true] %s690
          %693 = dma.vmem_to_hbm [thread:$0]  %s691, 256, %s688, %s671
        $region64: #{tpu_custom_call.1} parent=39 // pred_fallthru
          _
        // Predicated region
        $region65: #{tpu_custom_call.1} parent=39 // pred_check
          %p694 = pneg %p183
        $region66: #{tpu_custom_call.1} parent=39 // pred_check_branch
          %696 = sbr.rel (%p694) target = $region68
        $region67: #{tpu_custom_call.1} parent=39 // pred_region
          %s698 = ssub.s32 256, 256
          %699 = vsyncadd %s676, %s698
          %s700 = smul.addr %s29, 2
          %s701 = smul.addr %s700, 128
          %s702 = scalar_lea.hbm %s6, %s701
          %s704 = sshll.u32 %s679, 4
          %s705 = int_to_ptr.vmem [resolvable:$true] %s704
          %707 = dma.vmem_to_hbm [thread:$0]  %s705, 256, %s702, %s676
        $region68: #{tpu_custom_call.1} parent=39 // pred_fallthru
          _
      $region40: #{tpu_custom_call.1} parent=5 // pred_fallthru
        _
      %p708 = scmp.le.s32.totalorder 2, %s24
      // Predicated region
      $region69: #{tpu_custom_call.1} parent=5 // pred_check
        %p709 = pneg %p708
      $region70: #{tpu_custom_call.1} parent=5 // pred_check_branch
        %711 = sbr.rel (%p709) target = $region72
      $region71: #{tpu_custom_call.1} parent=5 // pred_region
        %s712 = ssub.s32 %s24, 2
        // Predicated region
        $region73: #{tpu_custom_call.1} parent=71 // pred_check
          %p713 = pneg %p163
        $region74: #{tpu_custom_call.1} parent=71 // pred_check_branch
          %715 = sbr.rel (%p713) target = $region76
        $region75: #{tpu_custom_call.1} parent=71 // pred_region
          %s716 = sand.u32 %s148, 1
          %s717 = scalar_lea.sflag [#allocation6], %s716
          %s718 = sand.u32 %s148, 1
          %s719 = smul.addr %s718, 16
          %s720 = scalar_lea.vmem [#allocation13], %s719
          %721 = dma.done %s717, 256
        $region76: #{tpu_custom_call.1} parent=71 // pred_fallthru
          _
        // Predicated region
        $region77: #{tpu_custom_call.1} parent=71 // pred_check
          %p722 = pneg %p189
        $region78: #{tpu_custom_call.1} parent=71 // pred_check_branch
          %724 = sbr.rel (%p722) target = $region80
        $region79: #{tpu_custom_call.1} parent=71 // pred_region
          %s725 = sand.u32 %s174, 1
          %s726 = scalar_lea.sflag [#allocation15], %s725
          %s727 = sand.u32 %s174, 1
          %s728 = smul.addr %s727, 16
          %s729 = scalar_lea.vmem [#allocation14], %s728
          %730 = dma.done %s726, 256
        $region80: #{tpu_custom_call.1} parent=71 // pred_fallthru
          _
      $region72: #{tpu_custom_call.1} parent=5 // pred_fallthru
        _
    $region6: #{tpu_custom_call.1} parent=1 // loop_footer
      %s28 = sadd.s32 1, %s24
    $region7: #{tpu_custom_call.1} parent=1 // loop_footer_branch
      %23 = sbr.rel target = $region3
    $region8: #{tpu_custom_call.1} parent=1 // loop_exit
      _
    %731 = vsyncpa [#allocation5], 1
    %s732 = scalar_lea.sflag [#allocation5], 1
    %733 = vsyncpa %s732, 1
    %734 = vsyncpa [#allocation8], 1
    %735 = vsyncpa [#allocation11], 1
    %736 = vsyncpa [#allocation6], 1
    %s737 = scalar_lea.sflag [#allocation6], 1
    %738 = vsyncpa %s737, 1
    %739 = vsyncpa [#allocation15], 1
    %s740 = scalar_lea.sflag [#allocation15], 1
    %741 = vsyncpa %s740, 1

</llo_original>
